<compile_context>
chip_gen: v6e
topology: v6e:2x2x1
jax: 0.10.0
libtpu: 0.0.40
codegen_flags: <defaults>
</compile_context>

<pallas_src>
import jax
import jax.numpy as jnp
from jax.experimental import pallas as pl
from jax.experimental.pallas import tpu as pltpu


def _round_up(v, m):
    return (v + m - 1) // m * m


# ---------------------------------------------------------------------------
# Pallas kernel: one fused, tiled GCN layer
#   grid = (n_row_tiles, n_col_tiles)          (reduction axis last)
#   acc += A[i, col_ids[i,k]] @ X[col_ids[i,k]]     (bf16 x bf16 -> f32, MXU)
#   at k == last:
#     Z[i]  = PReLU(acc @ W + b)                (projection hoisted out of k)
#     Gp[i] = pool[:, i_tile] @ Z[i]            (partial global_add_pool)
# ---------------------------------------------------------------------------
def _make_gcn_layer_kernel(tile, num_nodes):
    def kernel(counts_ref, col_ids_ref, adj_ref, x_ref, w_ref, b_ref,
               alpha_ref, pool_ref, z_ref, g_ref, acc_ref):
        i = pl.program_id(0)
        k = pl.program_id(1)

        @pl.when(k == 0)
        def _():
            acc_ref[...] = jnp.zeros_like(acc_ref)

        # Only the first counts[i] entries of the col-id list are real nonzero
        # adjacency tiles; the rest repeat the last valid id, so their DMA is
        # elided by the pipeline (unchanged block index) and the MXU is skipped.
        @pl.when(k < counts_ref[i])
        def _():
            acc_ref[...] += jnp.dot(adj_ref[...], x_ref[...],
                                    preferred_element_type=jnp.float32)

        @pl.when(k == pl.num_programs(1) - 1)
        def _():
            h = jnp.dot(acc_ref[...], w_ref[...],
                        preferred_element_type=jnp.float32) + b_ref[...]
            z = jnp.where(h > 0.0, h, alpha_ref[...] * h)    # per-channel PReLU
            # zero padded node rows (keeps padded z clean for downstream use)
            rows = i * tile + jax.lax.broadcasted_iota(jnp.int32, h.shape, 0)
            z = jnp.where(rows < num_nodes, z, 0.0)
            z_bf = z.astype(jnp.bfloat16)
            z_ref[...] = z_bf
            # pooling: bf16 x bf16 -> f32 accumulation (pool is exact 0/1)
            g_ref[...] = jnp.dot(pool_ref[...], z_bf,
                                 preferred_element_type=jnp.float32)[None]

    return kernel


def gcn_layer(x, w, b, alpha, adj, pool, counts, col_ids, tile, num_nodes):
    n_pad, in_p = x.shape
    h_pad = w.shape[1]
    b_pad = pool.shape[0]
    n_rt = adj.shape[0] // tile
    n_ct = adj.shape[1] // tile

    kernel = _make_gcn_layer_kernel(tile, num_nodes)

    grid_spec = pltpu.PrefetchScalarGridSpec(
        num_scalar_prefetch=2,               # counts, col_ids -> SMEM (1-D)
        grid=(n_rt, n_ct),
        in_specs=[
            # adjacency tile, column chosen by compressed col-id list
            pl.BlockSpec((tile, tile),
                         lambda i, k, cnt, cid: (i, cid[i * n_ct + k])),
            # feature tile for that same column (fetched only when needed)
            pl.BlockSpec((tile, in_p),
                         lambda i, k, cnt, cid: (cid[i * n_ct + k], 0)),
            pl.BlockSpec((in_p, h_pad), lambda i, k, cnt, cid: (0, 0)),   # W
            pl.BlockSpec((1, h_pad), lambda i, k, cnt, cid: (0, 0)),      # bias
            pl.BlockSpec((1, h_pad), lambda i, k, cnt, cid: (0, 0)),      # alpha
            pl.BlockSpec((b_pad, tile), lambda i, k, cnt, cid: (0, i)),   # pool
        ],
        out_specs=(
            pl.BlockSpec((tile, h_pad), lambda i, k, cnt, cid: (i, 0)),        # z
            pl.BlockSpec((1, b_pad, h_pad), lambda i, k, cnt, cid: (i, 0, 0)),  # g
        ),
        scratch_shapes=[pltpu.VMEM((tile, in_p), jnp.float32)],
    )

    # explicit VMEM budget with headroom (v7x-safe: capped at 64 MiB)
    needed = (2 * tile * tile * 2 + 2 * tile * in_p * 2 + 2 * in_p * h_pad * 4
              + 2 * tile * h_pad * 2 + 2 * b_pad * tile * 2
              + 2 * b_pad * h_pad * 4 + tile * in_p * 4 + (4 << 20))
    vmem_limit = int(min(max(2 * needed, 32 << 20), 64 << 20))

    z, g_part = pl.pallas_call(
        kernel,
        out_shape=(jax.ShapeDtypeStruct((n_pad, h_pad), jnp.bfloat16),
                   jax.ShapeDtypeStruct((n_rt, b_pad, h_pad), jnp.float32)),
        grid_spec=grid_spec,
        compiler_params=pltpu.CompilerParams(
            dimension_semantics=("parallel", "arbitrary"),
            vmem_limit_bytes=vmem_limit),
    )(counts, col_ids, adj, x, w, b, alpha, pool)
    # tiny cross-row-tile reduction of the partial pooled sums
    return z, jnp.sum(g_part, axis=0)


# ---------------------------------------------------------------------------
# Plain-JAX glue: sparse graph -> dense normalized bf16 adjacency + compressed
# per-row-tile column-tile lists (built from edge_index, O(E), no N^2 scan).
# ---------------------------------------------------------------------------
def build_norm_adj_bf16(edge_index, edge_weight, num_nodes, padded_nodes):
    row, col = edge_index[0], edge_index[1]
    if edge_weight is None:
        ew = jnp.ones(row.shape[0], jnp.float32)
    else:
        ew = edge_weight.astype(jnp.float32)
    # add self loops (fill value 1.0), as GCNConv does by default
    loop = jnp.arange(num_nodes, dtype=row.dtype)
    row = jnp.concatenate([row, loop])
    col = jnp.concatenate([col, loop])
    ew = jnp.concatenate([ew, jnp.ones(num_nodes, jnp.float32)])
    # symmetric normalization D^{-1/2} (A+I) D^{-1/2}
    deg = jnp.zeros(padded_nodes, jnp.float32).at[col].add(ew)
    dinv = jnp.where(deg > 0, jax.lax.rsqrt(deg), 0.0)
    norm = dinv[row] * ew * dinv[col]
    # aggregation: out[i] = sum over edges (j -> i) of norm * z[j]
    adj = jnp.zeros((padded_nodes, padded_nodes),
                    jnp.bfloat16).at[col, row].add(norm.astype(jnp.bfloat16))
    return adj, row, col


def build_tile_col_ids(row, col, tile, n_rt, n_ct):
    # adjacency entry lives at adj[col_e, row_e] -> tile (col_e//t, row_e//t)
    mask = jnp.zeros((n_rt, n_ct), jnp.bool_).at[col // tile,
                                                 row // tile].set(True)
    counts = jnp.sum(mask, axis=1).astype(jnp.int32)
    idx = jnp.arange(n_ct, dtype=jnp.int32)[None, :]
    # nonzero column tiles first (ascending), zeros after
    key = jnp.where(mask, idx, idx + n_ct)
    order = jnp.argsort(key, axis=1).astype(jnp.int32)
    # pad entries past counts[i] with the last valid id -> pipeline skips DMA
    last = jnp.take_along_axis(order, jnp.maximum(counts - 1, 0)[:, None],
                               axis=1)
    col_ids = jnp.where(idx < counts[:, None], order, last)
    return counts, col_ids.reshape(-1)


# ---------------------------------------------------------------------------
# GConv module forward
# ---------------------------------------------------------------------------
def init_gconv_params(key, input_dim, hidden_dim, num_layers):
    params = []
    for i in range(num_layers):
        in_dim = input_dim if i == 0 else hidden_dim
        key, kw = jax.random.split(key)
        scale = jnp.sqrt(6.0 / (in_dim + hidden_dim))     # Glorot-style init
        w = jax.random.uniform(kw, (in_dim, hidden_dim), jnp.float32,
                               minval=-scale, maxval=scale)
        b = jnp.zeros((1, hidden_dim), jnp.float32)
        params.append((w, b))
    # shared PReLU(hidden_dim), PyTorch default init 0.25 per channel
    alpha = jnp.full((1, hidden_dim), 0.25, jnp.float32)
    return params, alpha


def gconv_forward(params, alpha, batch, x, edge_index, num_graphs,
                  edge_weight=None):
    num_nodes = x.shape[0]
    hidden = params[0][0].shape[1]

    # static padded sizes: node dim -> tile multiple (row-tile count kept even
    # when > 1 for v7x dual-TC sharding), feature dims -> 128 lanes,
    # graph dim -> 8 sublanes.
    tile = min(512, _round_up(max(num_nodes, 1), 128))
    n_rt = -(-num_nodes // tile)
    if n_rt > 1 and n_rt % 2 == 1:
        n_rt += 1
    n_pad = n_rt * tile
    n_ct = n_rt
    h_pad = _round_up(hidden, 128)
    b_pad = _round_up(num_graphs, 8)

    # bf16 normalized adjacency + compressed nonzero column-tile lists
    adj, row_sl, col_sl = build_norm_adj_bf16(edge_index, edge_weight,
                                              num_nodes, n_pad)
    counts, col_ids = build_tile_col_ids(row_sl, col_sl, tile, n_rt, n_ct)

    # pooling matrix (padded nodes tagged -1 => contribute to no graph)
    batch_p = jnp.full((n_pad,), -1, jnp.int32).at[:num_nodes].set(
        batch.astype(jnp.int32))
    pool = (batch_p[None, :] ==
            jnp.arange(b_pad, dtype=jnp.int32)[:, None]).astype(jnp.bfloat16)

    z_bf = None
    gs = []
    for li, (w, b) in enumerate(params):
        in_dim = w.shape[0]
        in_p = _round_up(in_dim, 128)
        if li == 0:
            xp = jnp.pad(x.astype(jnp.bfloat16),
                         ((0, n_pad - num_nodes), (0, in_p - in_dim)))
        else:
            xp = z_bf            # kernel already emitted padded bf16 z
        wp = jnp.pad(w, ((0, in_p - in_dim), (0, h_pad - hidden)))
        bp = jnp.pad(b.reshape(1, -1), ((0, 0), (0, h_pad - hidden)))
        ap = jnp.pad(alpha.reshape(1, -1), ((0, 0), (0, h_pad - hidden)))

        z_bf, g_pad = gcn_layer(xp, wp, bp, ap, adj, pool, counts, col_ids,
                                tile, num_nodes)
        gs.append(g_pad[:num_graphs, :hidden])

    z_out = z_bf[:num_nodes, :hidden].astype(jnp.float32)
    g = jnp.concatenate(gs, axis=1)
    return z_out, g


# ---------------------------------------------------------------------------
# Dense pure-JAX reference (f32) for a correctness sanity check
# ---------------------------------------------------------------------------
def _build_norm_adj_f32(edge_index, edge_weight, num_nodes):
    row, col = edge_index[0], edge_index[1]
    ew = (jnp.ones(row.shape[0], jnp.float32) if edge_weight is None
          else edge_weight.astype(jnp.float32))
    loop = jnp.arange(num_nodes, dtype=row.dtype)
    row = jnp.concatenate([row, loop])
    col = jnp.concatenate([col, loop])
    ew = jnp.concatenate([ew, jnp.ones(num_nodes, jnp.float32)])
    deg = jnp.zeros(num_nodes, jnp.float32).at[col].add(ew)
    dinv = jnp.where(deg > 0, jax.lax.rsqrt(deg), 0.0)
    norm = dinv[row] * ew * dinv[col]
    return jnp.zeros((num_nodes, num_nodes),
                     jnp.float32).at[col, row].add(norm)


def gconv_reference(params, alpha, batch, x, edge_index, num_graphs,
                    edge_weight=None):
    n = x.shape[0]
    adj = _build_norm_adj_f32(edge_index, edge_weight, n)
    pool = (batch[None, :] ==
            jnp.arange(num_graphs)[:, None]).astype(jnp.float32)
    z = x.astype(jnp.float32)
    gs = []
    for (w, b) in params:
        z = adj @ (z @ w) + b.reshape(1, -1)
        z = jnp.where(z > 0, z, alpha.reshape(1, -1) * z)
        gs.append(pool @ z)
    return z, jnp.concatenate(gs, axis=1)


if __name__ == "__main__":
    input_dim, hidden_dim, num_layers = 4, 32, 2
    num_nodes, num_graphs = 8, 2

    key = jax.random.PRNGKey(0)
    key, kx = jax.random.split(key)
    x = jax.random.normal(kx, (num_nodes, input_dim), jnp.float32)

    # two 4-node ring graphs (directed both ways); nodes 0-3 -> graph 0, 4-7 -> graph 1
    src = jnp.array([0, 1, 2, 3, 1, 2, 3, 0, 4, 5, 6, 7, 5, 6, 7, 4], jnp.int32)
    dst = jnp.array([1, 2, 3, 0, 0, 1, 2, 3, 5, 6, 7, 4, 4, 5, 6, 7], jnp.int32)
    edge_index = jnp.stack([src, dst], axis=0)
    batch = jnp.array([0, 0, 0, 0, 1, 1, 1, 1], jnp.int32)

    params, alpha = init_gconv_params(key, input_dim, hidden_dim, num_layers)

    fwd = jax.jit(gconv_forward, static_argnames=("num_graphs",))
    z, g = fwd(params, alpha, batch, x, edge_index, num_graphs=num_graphs)
    jax.block_until_ready((z, g))

    assert z.shape == (num_nodes, hidden_dim)
    assert g.shape == (num_graphs, hidden_dim * num_layers)

    z_ref, g_ref = gconv_reference(params, alpha, batch, x, edge_index,
                                   num_graphs)
    assert bool(jnp.allclose(z, z_ref, rtol=5e-2, atol=5e-2))
    assert bool(jnp.allclose(g, g_ref, rtol=5e-2, atol=5e-2))

    print("KERNEL_OK")
</pallas_src>

<mosaic_0001>
module attributes {stable_mosaic.version = 11 : i64} {
  func.func private @main(%arg0: i32) attributes {dimension_semantics = [#tpu.dimension_semantics<core_parallel>], iteration_bounds = array<i64: 2>, tpu.core_type = #tpu.core_type<sc_scalar_subcore>, window_params = []} {
    return
  }
}

module attributes {stable_mosaic.version = 11 : i64} {
  func.func private @main(%arg0: i32) attributes {dimension_semantics = [#tpu.dimension_semantics<core_parallel>], iteration_bounds = array<i64: 2>, tpu.core_type = #tpu.core_type<sc_scalar_subcore>, window_params = []} {
    return
  }
}

module attributes {stable_mosaic.version = 11 : i64} {
  func.func @kernel(%arg0: i32, %arg1: i32, %arg2: memref<1xi32, #tpu.memory_space<smem>>, %arg3: memref<1xi32, #tpu.memory_space<smem>>, %arg4: memref<128x128xbf16, #tpu.memory_space<vmem>>, %arg5: memref<128x128xbf16, #tpu.memory_space<vmem>>, %arg6: memref<128x128xf32, #tpu.memory_space<vmem>>, %arg7: memref<1x128xf32, #tpu.memory_space<vmem>>, %arg8: memref<1x128xf32, #tpu.memory_space<vmem>>, %arg9: memref<8x128xbf16, #tpu.memory_space<vmem>>, %arg10: memref<128x128xbf16, #tpu.memory_space<vmem>>, %arg11: memref<1x8x128xf32, #tpu.memory_space<vmem>>, %arg12: memref<128x128xf32, #tpu.memory_space<vmem>>) attributes {dimension_semantics = [#tpu.dimension_semantics<parallel>, #tpu.dimension_semantics<arbitrary>], iteration_bounds = array<i64: 1, 1>, scalar_prefetch = 2 : i64, scratch_operands = 1 : i64, tpu.core_type = #tpu.core_type<tc>, window_params = [{transform_indices = @transform_0, window_bounds = array<i64: 128, 128>}, {transform_indices = @transform_1, window_bounds = array<i64: 128, 128>}, {pipeline_mode = #tpu.pipeline_mode<synchronous>, transform_indices = @transform_2, window_bounds = array<i64: 128, 128>}, {pipeline_mode = #tpu.pipeline_mode<synchronous>, transform_indices = @transform_3, window_bounds = array<i64: 1, 128>}, {pipeline_mode = #tpu.pipeline_mode<synchronous>, transform_indices = @transform_4, window_bounds = array<i64: 1, 128>}, {transform_indices = @transform_5, window_bounds = array<i64: 8, 128>}, {transform_indices = @transform_6, window_bounds = array<i64: 128, 128>}, {transform_indices = @transform_7, window_bounds = array<i64: 1, 8, 128>}]} {
    %c0_i32 = arith.constant 0 : i32
    %0 = arith.cmpi eq, %arg1, %c0_i32 : i32
    %1 = arith.extui %0 : i1 to i32
    %c0_i32_0 = arith.constant 0 : i32
    %2 = arith.cmpi ne, %1, %c0_i32_0 : i32
    scf.if %2 {
      %cst = arith.constant 0.000000e+00 : f32
      %11 = vector.broadcast %cst : f32 to vector<128x128xf32>
      %c0 = arith.constant 0 : index
      %c0_4 = arith.constant 0 : index
      %12 = vector.load %arg12[%c0, %c0_4] : memref<128x128xf32, #tpu.memory_space<vmem>>, vector<128x128xf32>
      tpu.vector_store %arg12[%c0, %c0_4], %11 {strides = array<i32>} : memref<128x128xf32, #tpu.memory_space<vmem>>, vector<128x128xf32>,
    } else {
    }
    %3 = arith.index_cast %arg0 : i32 to index
    %4 = memref.load %arg2[%3] : memref<1xi32, #tpu.memory_space<smem>>
    %5 = arith.cmpi slt, %arg1, %4 : i32
    %6 = arith.extui %5 : i1 to i32
    %c0_i32_1 = arith.constant 0 : i32
    %7 = arith.cmpi ne, %6, %c0_i32_1 : i32
    scf.if %7 {
      %c0 = arith.constant 0 : index
      %c0_4 = arith.constant 0 : index
      %11 = vector.load %arg12[%c0, %c0_4] : memref<128x128xf32, #tpu.memory_space<vmem>>, vector<128x128xf32>
      %c0_5 = arith.constant 0 : index
      %c0_6 = arith.constant 0 : index
      %12 = vector.load %arg4[%c0_5, %c0_6] : memref<128x128xbf16, #tpu.memory_space<vmem>>, vector<128x128xbf16>
      %c0_7 = arith.constant 0 : index
      %c0_8 = arith.constant 0 : index
      %13 = vector.load %arg5[%c0_7, %c0_8] : memref<128x128xbf16, #tpu.memory_space<vmem>>, vector<128x128xbf16>
      %cst = arith.constant dense<0.000000e+00> : vector<128x128xf32>
      %14 = tpu.matmul %12, %13, %cst {dimension_numbers = #tpu.dot_dimension_numbers<[1], [0], [0], [1], [0, 0, 1, 1], [], []>} : vector<128x128xbf16>, vector<128x128xbf16>, vector<128x128xf32> -> vector<128x128xf32>
      %15 = arith.addf %11, %14 : vector<128x128xf32>
      %c0_9 = arith.constant 0 : index
      %c0_10 = arith.constant 0 : index
      %16 = vector.load %arg12[%c0_9, %c0_10] : memref<128x128xf32, #tpu.memory_space<vmem>>, vector<128x128xf32>
      tpu.vector_store %arg12[%c0_9, %c0_10], %15 {strides = array<i32>} : memref<128x128xf32, #tpu.memory_space<vmem>>, vector<128x128xf32>,
    } else {
    }
    %c0_i32_2 = arith.constant 0 : i32
    %8 = arith.cmpi eq, %arg1, %c0_i32_2 : i32
    %9 = arith.extui %8 : i1 to i32
    %c0_i32_3 = arith.constant 0 : i32
    %10 = arith.cmpi ne, %9, %c0_i32_3 : i32
    scf.if %10 {
      %c0 = arith.constant 0 : index
      %c0_4 = arith.constant 0 : index
      %11 = vector.load %arg12[%c0, %c0_4] : memref<128x128xf32, #tpu.memory_space<vmem>>, vector<128x128xf32>
      %c0_5 = arith.constant 0 : index
      %c0_6 = arith.constant 0 : index
      %12 = vector.load %arg6[%c0_5, %c0_6] : memref<128x128xf32, #tpu.memory_space<vmem>>, vector<128x128xf32>
      %cst = arith.constant dense<0.000000e+00> : vector<128x128xf32>
      %13 = tpu.matmul %11, %12, %cst {dimension_numbers = #tpu.dot_dimension_numbers<[1], [0], [0], [1], [0, 0, 1, 1], [], []>} : vector<128x128xf32>, vector<128x128xf32>, vector<128x128xf32> -> vector<128x128xf32>
      %c0_7 = arith.constant 0 : index
      %c0_8 = arith.constant 0 : index
      %14 = vector.load %arg7[%c0_7, %c0_8] : memref<1x128xf32, #tpu.memory_space<vmem>>, vector<1x128xf32>
      %15 = vector.broadcast %14 : vector<1x128xf32> to vector<128x128xf32>
      %16 = arith.addf %13, %15 : vector<128x128xf32>
      %cst_9 = arith.constant 0.000000e+00 : f32
      %17 = vector.broadcast %cst_9 : f32 to vector<128x128xf32>
      %18 = arith.cmpf ogt, %16, %17 : vector<128x128xf32>
      %c0_10 = arith.constant 0 : index
      %c0_11 = arith.constant 0 : index
      %19 = vector.load %arg8[%c0_10, %c0_11] : memref<1x128xf32, #tpu.memory_space<vmem>>, vector<1x128xf32>
      %20 = vector.broadcast %19 : vector<1x128xf32> to vector<128x128xf32>
      %21 = arith.mulf %20, %16 : vector<128x128xf32>
      %22 = arith.select %18, %16, %21 : vector<128x128xi1>, vector<128x128xf32>
      %c128_i32 = arith.constant 128 : i32
      %23 = arith.muli %arg0, %c128_i32 : i32
      %24 = tpu.iota {dimensions = array<i32: 0>} : vector<128x128xi32>
      %25 = vector.broadcast %23 : i32 to vector<128x128xi32>
      %26 = arith.addi %25, %24 : vector<128x128xi32>
      %c8_i32 = arith.constant 8 : i32
      %27 = vector.broadcast %c8_i32 : i32 to vector<128x128xi32>
      %28 = arith.cmpi slt, %26, %27 : vector<128x128xi32>
      %cst_12 = arith.constant 0.000000e+00 : f32
      %29 = vector.broadcast %cst_12 : f32 to vector<128x128xf32>
      %30 = arith.select %28, %22, %29 : vector<128x128xi1>, vector<128x128xf32>
      %31 = arith.truncf %30 : vector<128x128xf32> to vector<128x128xbf16>
      %c0_13 = arith.constant 0 : index
      %c0_14 = arith.constant 0 : index
      %32 = vector.load %arg10[%c0_13, %c0_14] : memref<128x128xbf16, #tpu.memory_space<vmem>>, vector<128x128xbf16>
      tpu.vector_store %arg10[%c0_13, %c0_14], %31 {strides = array<i32>} : memref<128x128xbf16, #tpu.memory_space<vmem>>, vector<128x128xbf16>,
      %c0_15 = arith.constant 0 : index
      %c0_16 = arith.constant 0 : index
      %33 = vector.load %arg9[%c0_15, %c0_16] : memref<8x128xbf16, #tpu.memory_space<vmem>>, vector<8x128xbf16>
      %cst_17 = arith.constant dense<0.000000e+00> : vector<8x128xf32>
      %34 = tpu.matmul %33, %31, %cst_17 {dimension_numbers = #tpu.dot_dimension_numbers<[1], [0], [0], [1], [0, 0, 1, 1], [], []>} : vector<8x128xbf16>, vector<128x128xbf16>, vector<8x128xf32> -> vector<8x128xf32>
      %35 = vector.shape_cast %34 : vector<8x128xf32> to vector<1x8x128xf32>
      %c0_18 = arith.constant 0 : index
      %c0_19 = arith.constant 0 : index
      %c0_20 = arith.constant 0 : index
      %36 = vector.load %arg11[%c0_18, %c0_19, %c0_20] : memref<1x8x128xf32, #tpu.memory_space<vmem>>, vector<1x8x128xf32>
      tpu.vector_store %arg11[%c0_18, %c0_19, %c0_20], %35 {strides = array<i32>} : memref<1x8x128xf32, #tpu.memory_space<vmem>>, vector<1x8x128xf32>,
    } else {
    }
    return
  }
  func.func @transform_0(%arg0: i32, %arg1: i32, %arg2: memref<1xi32, #tpu.memory_space<smem>>, %arg3: memref<1xi32, #tpu.memory_space<smem>>) -> (i32, i32) {
    %c1_i32 = arith.constant 1 : i32
    %0 = arith.muli %arg0, %c1_i32 : i32
    %1 = arith.addi %0, %arg1 : i32
    %2 = arith.index_cast %1 : i32 to index
    %3 = memref.load %arg3[%2] : memref<1xi32, #tpu.memory_space<smem>>
    %c0_i32 = arith.constant 0 : i32
    return %arg0, %3 : i32, i32
  }
  func.func @transform_1(%arg0: i32, %arg1: i32, %arg2: memref<1xi32, #tpu.memory_space<smem>>, %arg3: memref<1xi32, #tpu.memory_space<smem>>) -> (i32, i32) {
    %c1_i32 = arith.constant 1 : i32
    %0 = arith.muli %arg0, %c1_i32 : i32
    %1 = arith.addi %0, %arg1 : i32
    %2 = arith.index_cast %1 : i32 to index
    %3 = memref.load %arg3[%2] : memref<1xi32, #tpu.memory_space<smem>>
    %c0_i32 = arith.constant 0 : i32
    %c0_i32_0 = arith.constant 0 : i32
    return %3, %c0_i32 : i32, i32
  }
  func.func @transform_2(%arg0: i32, %arg1: i32, %arg2: memref<1xi32, #tpu.memory_space<smem>>, %arg3: memref<1xi32, #tpu.memory_space<smem>>) -> (i32, i32) {
    %c0_i32 = arith.constant 0 : i32
    %c0_i32_0 = arith.constant 0 : i32
    %c0_i32_1 = arith.constant 0 : i32
    return %c0_i32, %c0_i32_0 : i32, i32
  }
  func.func @transform_3(%arg0: i32, %arg1: i32, %arg2: memref<1xi32, #tpu.memory_space<smem>>, %arg3: memref<1xi32, #tpu.memory_space<smem>>) -> (i32, i32) {
    %c0_i32 = arith.constant 0 : i32
    %c0_i32_0 = arith.constant 0 : i32
    %c0_i32_1 = arith.constant 0 : i32
    return %c0_i32, %c0_i32_0 : i32, i32
  }
  func.func @transform_4(%arg0: i32, %arg1: i32, %arg2: memref<1xi32, #tpu.memory_space<smem>>, %arg3: memref<1xi32, #tpu.memory_space<smem>>) -> (i32, i32) {
    %c0_i32 = arith.constant 0 : i32
    %c0_i32_0 = arith.constant 0 : i32
    %c0_i32_1 = arith.constant 0 : i32
    return %c0_i32, %c0_i32_0 : i32, i32
  }
  func.func @transform_5(%arg0: i32, %arg1: i32, %arg2: memref<1xi32, #tpu.memory_space<smem>>, %arg3: memref<1xi32, #tpu.memory_space<smem>>) -> (i32, i32) {
    %c0_i32 = arith.constant 0 : i32
    %c0_i32_0 = arith.constant 0 : i32
    return %c0_i32, %arg0 : i32, i32
  }
  func.func @transform_6(%arg0: i32, %arg1: i32, %arg2: memref<1xi32, #tpu.memory_space<smem>>, %arg3: memref<1xi32, #tpu.memory_space<smem>>) -> (i32, i32) {
    %c0_i32 = arith.constant 0 : i32
    %c0_i32_0 = arith.constant 0 : i32
    return %arg0, %c0_i32 : i32, i32
  }
  func.func @transform_7(%arg0: i32, %arg1: i32, %arg2: memref<1xi32, #tpu.memory_space<smem>>, %arg3: memref<1xi32, #tpu.memory_space<smem>>) -> (i32, i32, i32) {
    %c0_i32 = arith.constant 0 : i32
    %c0_i32_0 = arith.constant 0 : i32
    %c0_i32_1 = arith.constant 0 : i32
    return %arg0, %c0_i32, %c0_i32_0 : i32, i32, i32
  }
}

</mosaic_0001>

<llo_original>
// kernel: gconv_forward.2
$region0: #{gconv_forward.2}
  #allocation0 [shape = 'u32[]', space=smem, size = 0x4, offset = 0x4, fixed_abs, tag = 'smem constant byte address 0x4 - core index']
  #allocation1 [shape = 'u32[144,128]{1,0:T(1,128)}', space=vmem, size = 0x12000, scoped, tag = 'internal scratch']
  #allocation2 [shape = 'f32[128,128]{1,0:T(8,128)}', space=vmem, size = 0x10000, scoped, tag = 'scratch operand']
  #allocation3 [shape = 's32[1]{0}', space=sflag, size = 0x4, scoped, tag = 'scoped memory for gconv_forward.2']
  #allocation4 [shape = 's32[1]{0:T(128)S(6)}', space=smem, size = 0x200, scoped, tag = 'prefetched SMEM operand 0']
  #allocation5 [shape = 's32[1]{0:T(128)S(6)}', space=smem, size = 0x200, scoped, tag = 'prefetched SMEM operand 1']
  %s0 = inlined_call_operand.<no memory space> [shape: s32[1], index: 0, kind: input, shape index: {}]
  %s1 = inlined_call_operand.<no memory space> [shape: s32[1], index: 1, kind: input, shape index: {}]
  %s2 = inlined_call_operand.vmem [shape: bf16[128,128], index: 2, kind: input, shape index: {}]
  %s3 = inlined_call_operand.vmem [shape: bf16[128,128], index: 3, kind: input, shape index: {}]
  %s4 = inlined_call_operand.vmem [shape: f32[128,128], index: 4, kind: input, shape index: {}]
  %s5 = inlined_call_operand.vmem [shape: f32[1,128], index: 5, kind: input, shape index: {}]
  %s6 = inlined_call_operand.vmem [shape: f32[1,128], index: 6, kind: input, shape index: {}]
  %s7 = inlined_call_operand.vmem [shape: bf16[8,128], index: 7, kind: input, shape index: {}]
  %s8 = inlined_call_operand.vmem [shape: bf16[128,128], index: 8, kind: output, shape index: {0}]
  %s9 = inlined_call_operand.vmem [shape: f32[1,8,128], index: 9, kind: output, shape index: {1}]
  %10 = xla_tuple %s8, %s9
  %s11 = sld [smem:[#allocation0]]
  $region54: #{gconv_forward.2} parent=0
    _
  %s13 = ssub.s32 1, %s11
  %s14 = scalar_select 0, %s13, %s11
  %15 = sst [smem:[#allocation4]] %s0
  %16 = sst [smem:[#allocation5]] %s1
  // Predicated region
  $region2: #{gconv_forward.2} parent=0 // pred_check
    _
  $region3: #{gconv_forward.2} parent=0 // pred_check_branch
    %18 = sbr.rel (0) target = $region5
  $region4: #{gconv_forward.2} parent=0 // pred_region
    %s19 = sadd.s32 0, 0
    %s20 = sld [smem:[#allocation5 + %s19]]
    %p21 = scmp.lt.s32.totalorder %s20, 0
    %s22 = scalar_select %p21, %s20, 0
    %s23 = smul.addr %s22, 4
    %s24 = scalar_lea.vmem %s2, %s23
    %s25 = sadd.s32 0, 0
    %s26 = sld [smem:[#allocation5 + %s25]]
  $region5: #{gconv_forward.2} parent=0 // pred_fallthru
    _
  // Predicated region
  $region6: #{gconv_forward.2} parent=0 // pred_check
    _
  $region7: #{gconv_forward.2} parent=0 // pred_check_branch
    %28 = sbr.rel (0) target = $region9
  $region8: #{gconv_forward.2} parent=0 // pred_region
    %s29 = sadd.s32 0, 0
    %s30 = sld [smem:[#allocation5 + %s29]]
    %s31 = smul.u32 16, %s30
    %p32 = scmp.lt.s32.totalorder %s31, 15
    %s33 = scalar_select %p32, %s31, 15
    %s34 = smul.addr %s33, 4
    %s35 = scalar_lea.vmem %s3, %s34
    %s36 = sadd.s32 0, 0
    %s37 = sld [smem:[#allocation5 + %s36]]
    %s38 = smul.u32 16, %s37
  $region9: #{gconv_forward.2} parent=0 // pred_fallthru
    _
  // Predicated region
  $region10: #{gconv_forward.2} parent=0 // pred_check
    _
  $region11: #{gconv_forward.2} parent=0 // pred_check_branch
    %40 = sbr.rel (0) target = $region13
  $region12: #{gconv_forward.2} parent=0 // pred_region
    _
  $region13: #{gconv_forward.2} parent=0 // pred_fallthru
    _
  // Predicated region
  $region14: #{gconv_forward.2} parent=0 // pred_check
    _
  $region15: #{gconv_forward.2} parent=0 // pred_check_branch
    %42 = sbr.rel (0) target = $region17
  $region16: #{gconv_forward.2} parent=0 // pred_region
    _
  $region17: #{gconv_forward.2} parent=0 // pred_fallthru
    _
  // Predicated region
  $region18: #{gconv_forward.2} parent=0 // pred_check
    _
  $region19: #{gconv_forward.2} parent=0 // pred_check_branch
    %44 = sbr.rel (0) target = $region21
  $region20: #{gconv_forward.2} parent=0 // pred_region
    _
  $region21: #{gconv_forward.2} parent=0 // pred_fallthru
    _
  // Predicated region
  $region22: #{gconv_forward.2} parent=0 // pred_check
    _
  $region23: #{gconv_forward.2} parent=0 // pred_check_branch
    %46 = sbr.rel (0) target = $region25
  $region24: #{gconv_forward.2} parent=0 // pred_region
    _
  $region25: #{gconv_forward.2} parent=0 // pred_fallthru
    _
  %s47 = sadd.s32 0, 0
  %s48 = sld [smem:[#allocation5 + %s47]]
  %p49 = scmp.lt.s32.totalorder %s48, 0
  %s50 = scalar_select %p49, %s48, 0
  %s51 = smul.addr %s50, 4
  %s52 = scalar_lea.vmem %s2, %s51
  %s53 = sadd.s32 0, 0
  %s54 = sld [smem:[#allocation5 + %s53]]
  %s55 = smul.u32 16, %s54
  %p56 = scmp.lt.s32.totalorder %s55, 15
  %s57 = scalar_select %p56, %s55, 15
  %s58 = smul.addr %s57, 4
  %s59 = scalar_lea.vmem %s3, %s58
  %s60 = sadd.s32 0, 0
  %s61 = sld [smem:[#allocation5 + %s60]]
  %p62 = scmp.lt.s32.totalorder %s61, 0
  %s63 = scalar_select %p62, %s61, 0
  %s64 = smul.addr %s63, 4
  %s65 = scalar_lea.vmem %s2, %s64
  %s66 = sadd.s32 0, 0
  %s67 = sld [smem:[#allocation5 + %s66]]
  %s68 = sadd.s32 0, 0
  %s69 = sld [smem:[#allocation5 + %s68]]
  %s70 = smul.u32 16, %s69
  %p71 = scmp.lt.s32.totalorder %s70, 15
  %s72 = scalar_select %p71, %s70, 15
  %s73 = smul.addr %s72, 4
  %s74 = scalar_lea.vmem %s3, %s73
  %s75 = sadd.s32 0, 0
  %s76 = sld [smem:[#allocation5 + %s75]]
  %s77 = smul.u32 16, %s76
  %p79 = scmp.eq.s32.totalorder 0, 0
  // Predicated region
  $region26: #{gconv_forward.2} parent=0 // pred_check
    %p80 = pneg %p79
  $region27: #{gconv_forward.2} parent=0 // pred_check_branch
    %82 = sbr.rel (%p80) target = $region29
  $region28: #{gconv_forward.2} parent=0 // pred_region
    %83 = vst [vmem:[#allocation2] sm:$0xff] 0.0
    %84 = vst [vmem:[#allocation2 + $0x8] sm:$0xff] 0.0
    %85 = vst [vmem:[#allocation2 + $0x10] sm:$0xff] 0.0
    %86 = vst [vmem:[#allocation2 + $0x18] sm:$0xff] 0.0
    %87 = vst [vmem:[#allocation2 + $0x20] sm:$0xff] 0.0
    %88 = vst [vmem:[#allocation2 + $0x28] sm:$0xff] 0.0
    %89 = vst [vmem:[#allocation2 + $0x30] sm:$0xff] 0.0
    %90 = vst [vmem:[#allocation2 + $0x38] sm:$0xff] 0.0
    %91 = vst [vmem:[#allocation2 + $0x40] sm:$0xff] 0.0
    %92 = vst [vmem:[#allocation2 + $0x48] sm:$0xff] 0.0
    %93 = vst [vmem:[#allocation2 + $0x50] sm:$0xff] 0.0
    %94 = vst [vmem:[#allocation2 + $0x58] sm:$0xff] 0.0
    %95 = vst [vmem:[#allocation2 + $0x60] sm:$0xff] 0.0
    %96 = vst [vmem:[#allocation2 + $0x68] sm:$0xff] 0.0
    %97 = vst [vmem:[#allocation2 + $0x70] sm:$0xff] 0.0
    %98 = vst [vmem:[#allocation2 + $0x78] sm:$0xff] 0.0
  $region29: #{gconv_forward.2} parent=0 // pred_fallthru
    _
  %s99 = sld [smem:[#allocation4]]
  %p100 = scmp.lt.s32.totalorder 0, %s99
  // Predicated region
  $region30: #{gconv_forward.2} parent=0 // pred_check
    %p101 = pneg %p100
  $region31: #{gconv_forward.2} parent=0 // pred_check_branch
    %103 = sbr.rel (%p101) target = $region33
  $region32: #{gconv_forward.2} parent=0 // pred_region
    %v104 = vld [vmem:[#allocation2] sm:$0xff]
    %v105 = vld [vmem:[#allocation2 + $0x8] sm:$0xff]
    %v106 = vld [vmem:[#allocation2 + $0x10] sm:$0xff]
    %v107 = vld [vmem:[#allocation2 + $0x18] sm:$0xff]
    %v108 = vld [vmem:[#allocation2 + $0x20] sm:$0xff]
    %v109 = vld [vmem:[#allocation2 + $0x28] sm:$0xff]
    %v110 = vld [vmem:[#allocation2 + $0x30] sm:$0xff]
    %v111 = vld [vmem:[#allocation2 + $0x38] sm:$0xff]
    %v112 = vld [vmem:[#allocation2 + $0x40] sm:$0xff]
    %v113 = vld [vmem:[#allocation2 + $0x48] sm:$0xff]
    %v114 = vld [vmem:[#allocation2 + $0x50] sm:$0xff]
    %v115 = vld [vmem:[#allocation2 + $0x58] sm:$0xff]
    %v116 = vld [vmem:[#allocation2 + $0x60] sm:$0xff]
    %v117 = vld [vmem:[#allocation2 + $0x68] sm:$0xff]
    %v118 = vld [vmem:[#allocation2 + $0x70] sm:$0xff]
    %v119 = vld [vmem:[#allocation2 + $0x78] sm:$0xff]
    %v120 = vld [vmem:[%s65] sm:$0xf]
    %v121 = vld [vmem:[%s65 + $0x4] sm:$0xf]
    %v122 = vld [vmem:[%s65 + $0x8] sm:$0xf]
    %v123 = vld [vmem:[%s65 + $0xc] sm:$0xf]
    %v124 = vld [vmem:[%s65 + $0x10] sm:$0xf]
    %v125 = vld [vmem:[%s65 + $0x14] sm:$0xf]
    %v126 = vld [vmem:[%s65 + $0x18] sm:$0xf]
    %v127 = vld [vmem:[%s65 + $0x1c] sm:$0xf]
    %v128 = vld [vmem:[%s65 + $0x20] sm:$0xf]
    %v129 = vld [vmem:[%s65 + $0x24] sm:$0xf]
    %v130 = vld [vmem:[%s65 + $0x28] sm:$0xf]
    %v131 = vld [vmem:[%s65 + $0x2c] sm:$0xf]
    %v132 = vld [vmem:[%s65 + $0x30] sm:$0xf]
    %v133 = vld [vmem:[%s65 + $0x34] sm:$0xf]
    %v134 = vld [vmem:[%s65 + $0x38] sm:$0xf]
    %v135 = vld [vmem:[%s65 + $0x3c] sm:$0xf]
    %v136 = vld [vmem:[%s74] sm:$0xf]
    %v137 = vld [vmem:[%s74 + $0x4] sm:$0xf]
    %v138 = vld [vmem:[%s74 + $0x8] sm:$0xf]
    %v139 = vld [vmem:[%s74 + $0xc] sm:$0xf]
    %v140 = vld [vmem:[%s74 + $0x10] sm:$0xf]
    %v141 = vld [vmem:[%s74 + $0x14] sm:$0xf]
    %v142 = vld [vmem:[%s74 + $0x18] sm:$0xf]
    %v143 = vld [vmem:[%s74 + $0x1c] sm:$0xf]
    %v144 = vld [vmem:[%s74 + $0x20] sm:$0xf]
    %v145 = vld [vmem:[%s74 + $0x24] sm:$0xf]
    %v146 = vld [vmem:[%s74 + $0x28] sm:$0xf]
    %v147 = vld [vmem:[%s74 + $0x2c] sm:$0xf]
    %v148 = vld [vmem:[%s74 + $0x30] sm:$0xf]
    %v149 = vld [vmem:[%s74 + $0x34] sm:$0xf]
    %v150 = vld [vmem:[%s74 + $0x38] sm:$0xf]
    %v151 = vld [vmem:[%s74 + $0x3c] sm:$0xf]
    %v168 = vunpack.c.l.b16 %v120
    %v169 = vunpack.c.l.b16 %v121
    %v170 = vunpack.c.l.b16 %v122
    %v171 = vunpack.c.l.b16 %v123
    %v172 = vunpack.c.l.b16 %v124
    %v173 = vunpack.c.l.b16 %v125
    %v174 = vunpack.c.l.b16 %v126
    %v175 = vunpack.c.l.b16 %v127
    %v176 = vunpack.c.l.b16 %v128
    %v177 = vunpack.c.l.b16 %v129
    %v178 = vunpack.c.l.b16 %v130
    %v179 = vunpack.c.l.b16 %v131
    %v180 = vunpack.c.l.b16 %v132
    %v181 = vunpack.c.l.b16 %v133
    %v182 = vunpack.c.l.b16 %v134
    %v183 = vunpack.c.l.b16 %v135
    %v184 = vpack.c.b16 %v169, %v168
    %v185 = vpack.c.b16 %v171, %v170
    %v186 = vpack.c.b16 %v173, %v172
    %v187 = vpack.c.b16 %v175, %v174
    %v188 = vpack.c.b16 %v177, %v176
    %v189 = vpack.c.b16 %v179, %v178
    %v190 = vpack.c.b16 %v181, %v180
    %v191 = vpack.c.b16 %v183, %v182
    %v216 = vunpack.c.l.b16 %v136
    %v217 = vunpack.c.l.b16 %v137
    %v218 = vunpack.c.l.b16 %v138
    %v219 = vunpack.c.l.b16 %v139
    %v220 = vunpack.c.l.b16 %v140
    %v221 = vunpack.c.l.b16 %v141
    %v222 = vunpack.c.l.b16 %v142
    %v223 = vunpack.c.l.b16 %v143
    %v224 = vunpack.c.l.b16 %v144
    %v225 = vunpack.c.l.b16 %v145
    %v226 = vunpack.c.l.b16 %v146
    %v227 = vunpack.c.l.b16 %v147
    %v228 = vunpack.c.l.b16 %v148
    %v229 = vunpack.c.l.b16 %v149
    %v230 = vunpack.c.l.b16 %v150
    %v231 = vunpack.c.l.b16 %v151
    %v232 = vpack.c.b16 %v217, %v216
    %v233 = vpack.c.b16 %v219, %v218
    %v234 = vpack.c.b16 %v221, %v220
    %v235 = vpack.c.b16 %v223, %v222
    %v236 = vpack.c.b16 %v225, %v224
    %v237 = vpack.c.b16 %v227, %v226
    %v238 = vpack.c.b16 %v229, %v228
    %v239 = vpack.c.b16 %v231, %v230
    %248 = vmatprep.subr.bf16.mxu0 0
    %249 = vmatpush1.bf16.msra.mxu0 %v239
    %250 = vmatprep.subr.bf16.mxu0 0
    %251 = vmatpush1.bf16.msra.mxu0 %v238
    %252 = vmatprep.subr.bf16.mxu0 0
    %253 = vmatpush1.bf16.msra.mxu0 %v237
    %254 = vmatprep.subr.bf16.mxu0 0
    %255 = vmatpush1.bf16.msra.mxu0 %v236
    %256 = vmatprep.subr.bf16.mxu0 0
    %257 = vmatpush1.bf16.msra.mxu0 %v235
    %258 = vmatprep.subr.bf16.mxu0 0
    %259 = vmatpush1.bf16.msra.mxu0 %v234
    %260 = vmatprep.subr.bf16.mxu0 0
    %261 = vmatpush1.bf16.msra.mxu0 %v233
    %262 = vmatprep.subr.bf16.mxu0 0
    %263 = vmatpush1.bf16.msra.mxu0 %v232
    %264 = vmatprep.subr.bf16.mxu0 0
    %265 = vmatpush2.bf16.msra.mxu0 0
    %266 = vmatprep.subr.bf16.mxu0 0
    %267 = vmatpush2.bf16.msra.mxu0 0
    %268 = vmatprep.subr.bf16.mxu0 0
    %269 = vmatpush2.bf16.msra.mxu0 0
    %270 = vmatprep.subr.bf16.mxu0 0
    %271 = vmatpush2.bf16.msra.mxu0 0
    %272 = vmatprep.subr.bf16.mxu0 0
    %273 = vmatpush2.bf16.msra.mxu0 0
    %274 = vmatprep.subr.bf16.mxu0 0
    %275 = vmatpush2.bf16.msra.mxu0 0
    %276 = vmatprep.subr.bf16.mxu0 0
    %277 = vmatpush2.bf16.msra.mxu0 0
    %278 = vmatprep.subr.bf16.mxu0 0
    %279 = vmatpush2.bf16.msra.mxu0 0
    %280 = vmatprep.mubr.bf16.mxu0 0
    %281 = vmatmul.mubr.bf16.gmra.mxu0 %v184
    %v282 = vpop.f32.mrf.mxu0
    %v283 = vadd.f32 0.0, %v282
    %v284 = vpop.f32.mrf.mxu0
    %v285 = vpop.f32.mrf.mxu0
    %v286 = vadd.f32 0.0, %v285
    %v287 = vpop.f32.mrf.mxu0
    %288 = vmatprep.mubr.bf16.mxu0 0
    %289 = vmatmul.mubr.bf16.gmra.mxu0 %v185
    %v290 = vpop.f32.mrf.mxu0
    %v291 = vadd.f32 0.0, %v290
    %v292 = vpop.f32.mrf.mxu0
    %v293 = vpop.f32.mrf.mxu0
    %v294 = vadd.f32 0.0, %v293
    %v295 = vpop.f32.mrf.mxu0
    %296 = vmatprep.mubr.bf16.mxu0 0
    %297 = vmatmul.mubr.bf16.gmra.mxu0 %v186
    %v298 = vpop.f32.mrf.mxu0
    %v299 = vadd.f32 0.0, %v298
    %v300 = vpop.f32.mrf.mxu0
    %v301 = vpop.f32.mrf.mxu0
    %v302 = vadd.f32 0.0, %v301
    %v303 = vpop.f32.mrf.mxu0
    %304 = vmatprep.mubr.bf16.mxu0 0
    %305 = vmatmul.mubr.bf16.gmra.mxu0 %v187
    %v306 = vpop.f32.mrf.mxu0
    %v307 = vadd.f32 0.0, %v306
    %v308 = vpop.f32.mrf.mxu0
    %v309 = vpop.f32.mrf.mxu0
    %v310 = vadd.f32 0.0, %v309
    %v311 = vpop.f32.mrf.mxu0
    %312 = vmatprep.mubr.bf16.mxu0 0
    %313 = vmatmul.mubr.bf16.gmra.mxu0 %v188
    %v314 = vpop.f32.mrf.mxu0
    %v315 = vadd.f32 0.0, %v314
    %v316 = vpop.f32.mrf.mxu0
    %v317 = vpop.f32.mrf.mxu0
    %v318 = vadd.f32 0.0, %v317
    %v319 = vpop.f32.mrf.mxu0
    %320 = vmatprep.mubr.bf16.mxu0 0
    %321 = vmatmul.mubr.bf16.gmra.mxu0 %v189
    %v322 = vpop.f32.mrf.mxu0
    %v323 = vadd.f32 0.0, %v322
    %v324 = vpop.f32.mrf.mxu0
    %v325 = vpop.f32.mrf.mxu0
    %v326 = vadd.f32 0.0, %v325
    %v327 = vpop.f32.mrf.mxu0
    %328 = vmatprep.mubr.bf16.mxu0 0
    %329 = vmatmul.mubr.bf16.gmra.mxu0 %v190
    %v330 = vpop.f32.mrf.mxu0
    %v331 = vadd.f32 0.0, %v330
    %v332 = vpop.f32.mrf.mxu0
    %v333 = vpop.f32.mrf.mxu0
    %v334 = vadd.f32 0.0, %v333
    %v335 = vpop.f32.mrf.mxu0
    %336 = vmatprep.mubr.bf16.mxu0 0
    %337 = vmatmul.mubr.bf16.gmra.mxu0 %v191
    %v338 = vpop.f32.mrf.mxu0
    %v339 = vadd.f32 0.0, %v338
    %v340 = vpop.f32.mrf.mxu0
    %v341 = vpop.f32.mrf.mxu0
    %v342 = vadd.f32 0.0, %v341
    %v343 = vpop.f32.mrf.mxu0
    %344 = vdwg.mxu0
    %v345 = vadd.f32 %v104, %v283
    %v346 = vadd.f32 %v105, %v286
    %v347 = vadd.f32 %v106, %v291
    %v348 = vadd.f32 %v107, %v294
    %v349 = vadd.f32 %v108, %v299
    %v350 = vadd.f32 %v109, %v302
    %v351 = vadd.f32 %v110, %v307
    %v352 = vadd.f32 %v111, %v310
    %v353 = vadd.f32 %v112, %v315
    %v354 = vadd.f32 %v113, %v318
    %v355 = vadd.f32 %v114, %v323
    %v356 = vadd.f32 %v115, %v326
    %v357 = vadd.f32 %v116, %v331
    %v358 = vadd.f32 %v117, %v334
    %v359 = vadd.f32 %v118, %v339
    %v360 = vadd.f32 %v119, %v342
    %361 = vst [vmem:[#allocation2] sm:$0xff] %v345
    %362 = vst [vmem:[#allocation2 + $0x8] sm:$0xff] %v346
    %363 = vst [vmem:[#allocation2 + $0x10] sm:$0xff] %v347
    %364 = vst [vmem:[#allocation2 + $0x18] sm:$0xff] %v348
    %365 = vst [vmem:[#allocation2 + $0x20] sm:$0xff] %v349
    %366 = vst [vmem:[#allocation2 + $0x28] sm:$0xff] %v350
    %367 = vst [vmem:[#allocation2 + $0x30] sm:$0xff] %v351
    %368 = vst [vmem:[#allocation2 + $0x38] sm:$0xff] %v352
    %369 = vst [vmem:[#allocation2 + $0x40] sm:$0xff] %v353
    %370 = vst [vmem:[#allocation2 + $0x48] sm:$0xff] %v354
    %371 = vst [vmem:[#allocation2 + $0x50] sm:$0xff] %v355
    %372 = vst [vmem:[#allocation2 + $0x58] sm:$0xff] %v356
    %373 = vst [vmem:[#allocation2 + $0x60] sm:$0xff] %v357
    %374 = vst [vmem:[#allocation2 + $0x68] sm:$0xff] %v358
    %375 = vst [vmem:[#allocation2 + $0x70] sm:$0xff] %v359
    %376 = vst [vmem:[#allocation2 + $0x78] sm:$0xff] %v360
  $region33: #{gconv_forward.2} parent=0 // pred_fallthru
    _
  // Predicated region
  $region34: #{gconv_forward.2} parent=0 // pred_check
    %p377 = pneg %p79
  $region35: #{gconv_forward.2} parent=0 // pred_check_branch
    %379 = sbr.rel (%p377) target = $region37
  $region36: #{gconv_forward.2} parent=0 // pred_region
    %v380 = vld [vmem:[#allocation2] sm:$0xff]
    %v381 = vld [vmem:[#allocation2 + $0x8] sm:$0xff]
    %v382 = vld [vmem:[#allocation2 + $0x10] sm:$0xff]
    %v383 = vld [vmem:[#allocation2 + $0x18] sm:$0xff]
    %v384 = vld [vmem:[#allocation2 + $0x20] sm:$0xff]
    %v385 = vld [vmem:[#allocation2 + $0x28] sm:$0xff]
    %v386 = vld [vmem:[#allocation2 + $0x30] sm:$0xff]
    %v387 = vld [vmem:[#allocation2 + $0x38] sm:$0xff]
    %v388 = vld [vmem:[#allocation2 + $0x40] sm:$0xff]
    %v389 = vld [vmem:[#allocation2 + $0x48] sm:$0xff]
    %v390 = vld [vmem:[#allocation2 + $0x50] sm:$0xff]
    %v391 = vld [vmem:[#allocation2 + $0x58] sm:$0xff]
    %v392 = vld [vmem:[#allocation2 + $0x60] sm:$0xff]
    %v393 = vld [vmem:[#allocation2 + $0x68] sm:$0xff]
    %v394 = vld [vmem:[#allocation2 + $0x70] sm:$0xff]
    %v395 = vld [vmem:[#allocation2 + $0x78] sm:$0xff]
    %v396 = vld [vmem:[%s4] sm:$0xff]
    %v397 = vld [vmem:[%s4 + $0x8] sm:$0xff]
    %v398 = vld [vmem:[%s4 + $0x10] sm:$0xff]
    %v399 = vld [vmem:[%s4 + $0x18] sm:$0xff]
    %v400 = vld [vmem:[%s4 + $0x20] sm:$0xff]
    %v401 = vld [vmem:[%s4 + $0x28] sm:$0xff]
    %v402 = vld [vmem:[%s4 + $0x30] sm:$0xff]
    %v403 = vld [vmem:[%s4 + $0x38] sm:$0xff]
    %v404 = vld [vmem:[%s4 + $0x40] sm:$0xff]
    %v405 = vld [vmem:[%s4 + $0x48] sm:$0xff]
    %v406 = vld [vmem:[%s4 + $0x50] sm:$0xff]
    %v407 = vld [vmem:[%s4 + $0x58] sm:$0xff]
    %v408 = vld [vmem:[%s4 + $0x60] sm:$0xff]
    %v409 = vld [vmem:[%s4 + $0x68] sm:$0xff]
    %v410 = vld [vmem:[%s4 + $0x70] sm:$0xff]
    %v411 = vld [vmem:[%s4 + $0x78] sm:$0xff]
    %v412 = vld [vmem:[%s5] sm:$0x1]
    %v414 = vlaneseq
    %v415 = vshrl.u32 %v414, 7
    %v416 = vsub.s32 0, %v415
    %v417 = vrot.slane %v412, %v416
    %419 = vmatprep.subr.mxu0 0.0
    %420 = vmatpush1.msra.mxu0 %v411
    %421 = vmatprep.subr.mxu0 0.0
    %422 = vmatpush1.msra.mxu0 %v410
    %423 = vmatprep.subr.mxu0 0.0
    %424 = vmatpush1.msra.mxu0 %v409
    %425 = vmatprep.subr.mxu0 0.0
    %426 = vmatpush1.msra.mxu0 %v408
    %427 = vmatprep.subr.mxu0 0.0
    %428 = vmatpush1.msra.mxu0 %v407
    %429 = vmatprep.subr.mxu0 0.0
    %430 = vmatpush1.msra.mxu0 %v406
    %431 = vmatprep.subr.mxu0 0.0
    %432 = vmatpush1.msra.mxu0 %v405
    %433 = vmatprep.subr.mxu0 0.0
    %434 = vmatpush1.msra.mxu0 %v404
    %435 = vmatprep.subr.mxu0 0.0
    %436 = vmatpush1.msra.mxu0 %v403
    %437 = vmatprep.subr.mxu0 0.0
    %438 = vmatpush1.msra.mxu0 %v402
    %439 = vmatprep.subr.mxu0 0.0
    %440 = vmatpush1.msra.mxu0 %v401
    %441 = vmatprep.subr.mxu0 0.0
    %442 = vmatpush1.msra.mxu0 %v400
    %443 = vmatprep.subr.mxu0 0.0
    %444 = vmatpush1.msra.mxu0 %v399
    %445 = vmatprep.subr.mxu0 0.0
    %446 = vmatpush1.msra.mxu0 %v398
    %447 = vmatprep.subr.mxu0 0.0
    %448 = vmatpush1.msra.mxu0 %v397
    %449 = vmatprep.subr.mxu0 0.0
    %450 = vmatpush1.msra.mxu0 %v396
    %451 = vmatprep.subr.mxu0 0.0
    %452 = vmatpush2.msra.mxu0 0.0
    %453 = vmatprep.subr.mxu0 0.0
    %454 = vmatpush2.msra.mxu0 0.0
    %455 = vmatprep.subr.mxu0 0.0
    %456 = vmatpush2.msra.mxu0 0.0
    %457 = vmatprep.subr.mxu0 0.0
    %458 = vmatpush2.msra.mxu0 0.0
    %459 = vmatprep.subr.mxu0 0.0
    %460 = vmatpush2.msra.mxu0 0.0
    %461 = vmatprep.subr.mxu0 0.0
    %462 = vmatpush2.msra.mxu0 0.0
    %463 = vmatprep.subr.mxu0 0.0
    %464 = vmatpush2.msra.mxu0 0.0
    %465 = vmatprep.subr.mxu0 0.0
    %466 = vmatpush2.msra.mxu0 0.0
    %467 = vmatprep.subr.mxu0 0.0
    %468 = vmatpush2.msra.mxu0 0.0
    %469 = vmatprep.subr.mxu0 0.0
    %470 = vmatpush2.msra.mxu0 0.0
    %471 = vmatprep.subr.mxu0 0.0
    %472 = vmatpush2.msra.mxu0 0.0
    %473 = vmatprep.subr.mxu0 0.0
    %474 = vmatpush2.msra.mxu0 0.0
    %475 = vmatprep.subr.mxu0 0.0
    %476 = vmatpush2.msra.mxu0 0.0
    %477 = vmatprep.subr.mxu0 0.0
    %478 = vmatpush2.msra.mxu0 0.0
    %479 = vmatprep.subr.mxu0 0.0
    %480 = vmatpush2.msra.mxu0 0.0
    %481 = vmatprep.subr.mxu0 0.0
    %482 = vmatpush2.msra.mxu0 0.0
    %483 = vmatprep.mubr.f32.mxu0 0.0
    %484 = vmatmul.mubr.f32.gmra.mxu0 %v380
    %v485 = vpop.f32.mrf.mxu0
    %v486 = vadd.f32 %v417, %v485
    %v487 = vpop.f32.mrf.mxu0
    %488 = vmatprep.mubr.f32.mxu0 0.0
    %489 = vmatmul.mubr.f32.gmra.mxu0 %v381
    %v490 = vpop.f32.mrf.mxu0
    %v491 = vadd.f32 %v417, %v490
    %v492 = vpop.f32.mrf.mxu0
    %493 = vmatprep.mubr.f32.mxu0 0.0
    %494 = vmatmul.mubr.f32.gmra.mxu0 %v382
    %v495 = vpop.f32.mrf.mxu0
    %v496 = vadd.f32 %v417, %v495
    %v497 = vpop.f32.mrf.mxu0
    %498 = vmatprep.mubr.f32.mxu0 0.0
    %499 = vmatmul.mubr.f32.gmra.mxu0 %v383
    %v500 = vpop.f32.mrf.mxu0
    %v501 = vadd.f32 %v417, %v500
    %v502 = vpop.f32.mrf.mxu0
    %503 = vmatprep.mubr.f32.mxu0 0.0
    %504 = vmatmul.mubr.f32.gmra.mxu0 %v384
    %v505 = vpop.f32.mrf.mxu0
    %v506 = vadd.f32 %v417, %v505
    %v507 = vpop.f32.mrf.mxu0
    %508 = vmatprep.mubr.f32.mxu0 0.0
    %509 = vmatmul.mubr.f32.gmra.mxu0 %v385
    %v510 = vpop.f32.mrf.mxu0
    %v511 = vadd.f32 %v417, %v510
    %v512 = vpop.f32.mrf.mxu0
    %513 = vmatprep.mubr.f32.mxu0 0.0
    %514 = vmatmul.mubr.f32.gmra.mxu0 %v386
    %v515 = vpop.f32.mrf.mxu0
    %v516 = vadd.f32 %v417, %v515
    %v517 = vpop.f32.mrf.mxu0
    %518 = vmatprep.mubr.f32.mxu0 0.0
    %519 = vmatmul.mubr.f32.gmra.mxu0 %v387
    %v520 = vpop.f32.mrf.mxu0
    %v521 = vadd.f32 %v417, %v520
    %v522 = vpop.f32.mrf.mxu0
    %523 = vmatprep.mubr.f32.mxu0 0.0
    %524 = vmatmul.mubr.f32.gmra.mxu0 %v388
    %v525 = vpop.f32.mrf.mxu0
    %v526 = vadd.f32 %v417, %v525
    %v527 = vpop.f32.mrf.mxu0
    %528 = vmatprep.mubr.f32.mxu0 0.0
    %529 = vmatmul.mubr.f32.gmra.mxu0 %v389
    %v530 = vpop.f32.mrf.mxu0
    %v531 = vadd.f32 %v417, %v530
    %v532 = vpop.f32.mrf.mxu0
    %533 = vmatprep.mubr.f32.mxu0 0.0
    %534 = vmatmul.mubr.f32.gmra.mxu0 %v390
    %v535 = vpop.f32.mrf.mxu0
    %v536 = vadd.f32 %v417, %v535
    %v537 = vpop.f32.mrf.mxu0
    %538 = vmatprep.mubr.f32.mxu0 0.0
    %539 = vmatmul.mubr.f32.gmra.mxu0 %v391
    %v540 = vpop.f32.mrf.mxu0
    %v541 = vadd.f32 %v417, %v540
    %v542 = vpop.f32.mrf.mxu0
    %543 = vmatprep.mubr.f32.mxu0 0.0
    %544 = vmatmul.mubr.f32.gmra.mxu0 %v392
    %v545 = vpop.f32.mrf.mxu0
    %v546 = vadd.f32 %v417, %v545
    %v547 = vpop.f32.mrf.mxu0
    %548 = vmatprep.mubr.f32.mxu0 0.0
    %549 = vmatmul.mubr.f32.gmra.mxu0 %v393
    %v550 = vpop.f32.mrf.mxu0
    %v551 = vadd.f32 %v417, %v550
    %v552 = vpop.f32.mrf.mxu0
    %553 = vmatprep.mubr.f32.mxu0 0.0
    %554 = vmatmul.mubr.f32.gmra.mxu0 %v394
    %v555 = vpop.f32.mrf.mxu0
    %v556 = vadd.f32 %v417, %v555
    %v557 = vpop.f32.mrf.mxu0
    %558 = vmatprep.mubr.f32.mxu0 0.0
    %559 = vmatmul.mubr.f32.gmra.mxu0 %v395
    %v560 = vpop.f32.mrf.mxu0
    %v561 = vadd.f32 %v417, %v560
    %v562 = vpop.f32.mrf.mxu0
    %563 = vdwg.mxu0
    %vm564 = vcmp.gt.f32.partialorder %v486, 0.0
    %vm565 = vcmp.gt.f32.partialorder %v491, 0.0
    %vm566 = vcmp.gt.f32.partialorder %v496, 0.0
    %vm567 = vcmp.gt.f32.partialorder %v501, 0.0
    %vm568 = vcmp.gt.f32.partialorder %v506, 0.0
    %vm569 = vcmp.gt.f32.partialorder %v511, 0.0
    %vm570 = vcmp.gt.f32.partialorder %v516, 0.0
    %vm571 = vcmp.gt.f32.partialorder %v521, 0.0
    %vm572 = vcmp.gt.f32.partialorder %v526, 0.0
    %vm573 = vcmp.gt.f32.partialorder %v531, 0.0
    %vm574 = vcmp.gt.f32.partialorder %v536, 0.0
    %vm575 = vcmp.gt.f32.partialorder %v541, 0.0
    %vm576 = vcmp.gt.f32.partialorder %v546, 0.0
    %vm577 = vcmp.gt.f32.partialorder %v551, 0.0
    %vm578 = vcmp.gt.f32.partialorder %v556, 0.0
    %vm579 = vcmp.gt.f32.partialorder %v561, 0.0
    %v580 = vld [vmem:[%s6] sm:$0x1]
    %v582 = vlaneseq
    %v583 = vshrl.u32 %v582, 7
    %v584 = vsub.s32 0, %v583
    %v585 = vrot.slane %v580, %v584
    %v587 = vmul.f32 %v585, %v486
    %v588 = vmul.f32 %v585, %v491
    %v589 = vmul.f32 %v585, %v496
    %v590 = vmul.f32 %v585, %v501
    %v591 = vmul.f32 %v585, %v506
    %v592 = vmul.f32 %v585, %v511
    %v593 = vmul.f32 %v585, %v516
    %v594 = vmul.f32 %v585, %v521
    %v595 = vmul.f32 %v585, %v526
    %v596 = vmul.f32 %v585, %v531
    %v597 = vmul.f32 %v585, %v536
    %v598 = vmul.f32 %v585, %v541
    %v599 = vmul.f32 %v585, %v546
    %v600 = vmul.f32 %v585, %v551
    %v601 = vmul.f32 %v585, %v556
    %v602 = vmul.f32 %v585, %v561
    %v603 = vsel %vm564, %v486, %v587
    %v604 = vsel %vm565, %v491, %v588
    %v605 = vsel %vm566, %v496, %v589
    %v606 = vsel %vm567, %v501, %v590
    %v607 = vsel %vm568, %v506, %v591
    %v608 = vsel %vm569, %v511, %v592
    %v609 = vsel %vm570, %v516, %v593
    %v610 = vsel %vm571, %v521, %v594
    %v611 = vsel %vm572, %v526, %v595
    %v612 = vsel %vm573, %v531, %v596
    %v613 = vsel %vm574, %v536, %v597
    %v614 = vsel %vm575, %v541, %v598
    %v615 = vsel %vm576, %v546, %v599
    %v616 = vsel %vm577, %v551, %v600
    %v617 = vsel %vm578, %v556, %v601
    %v618 = vsel %vm579, %v561, %v602
    %s619 = smul.u32 0, 128
    %v620 = vlaneseq
    %v621 = vshrl.u32 %v620, 7
    %v622 = vadd.s32 %v621, 8
    %v623 = vadd.s32 %v621, 16
    %v624 = vadd.s32 %v621, 24
    %v625 = vadd.s32 %v621, 32
    %v626 = vadd.s32 %v621, 40
    %v627 = vadd.s32 %v621, 48
    %v628 = vadd.s32 %v621, 56
    %v629 = vadd.s32 %v621, 64
    %v630 = vadd.s32 %v621, 72
    %v631 = vadd.s32 %v621, 80
    %v632 = vadd.s32 %v621, 88
    %v633 = vadd.s32 %v621, 96
    %v634 = vadd.s32 %v621, 104
    %v635 = vadd.s32 %v621, 112
    %v636 = vadd.s32 %v621, 120
    %v637 = vstv %s619
    %v638 = vadd.s32 %v637, %v621
    %v639 = vadd.s32 %v637, %v622
    %v640 = vadd.s32 %v637, %v623
    %v641 = vadd.s32 %v637, %v624
    %v642 = vadd.s32 %v637, %v625
    %v643 = vadd.s32 %v637, %v626
    %v644 = vadd.s32 %v637, %v627
    %v645 = vadd.s32 %v637, %v628
    %v646 = vadd.s32 %v637, %v629
    %v647 = vadd.s32 %v637, %v630
    %v648 = vadd.s32 %v637, %v631
    %v649 = vadd.s32 %v637, %v632
    %v650 = vadd.s32 %v637, %v633
    %v651 = vadd.s32 %v637, %v634
    %v652 = vadd.s32 %v637, %v635
    %v653 = vadd.s32 %v637, %v636
    %vm654 = vcmp.lt.s32.totalorder %v638, 8
    %vm655 = vcmp.lt.s32.totalorder %v639, 8
    %vm656 = vcmp.lt.s32.totalorder %v640, 8
    %vm657 = vcmp.lt.s32.totalorder %v641, 8
    %vm658 = vcmp.lt.s32.totalorder %v642, 8
    %vm659 = vcmp.lt.s32.totalorder %v643, 8
    %vm660 = vcmp.lt.s32.totalorder %v644, 8
    %vm661 = vcmp.lt.s32.totalorder %v645, 8
    %vm662 = vcmp.lt.s32.totalorder %v646, 8
    %vm663 = vcmp.lt.s32.totalorder %v647, 8
    %vm664 = vcmp.lt.s32.totalorder %v648, 8
    %vm665 = vcmp.lt.s32.totalorder %v649, 8
    %vm666 = vcmp.lt.s32.totalorder %v650, 8
    %vm667 = vcmp.lt.s32.totalorder %v651, 8
    %vm668 = vcmp.lt.s32.totalorder %v652, 8
    %vm669 = vcmp.lt.s32.totalorder %v653, 8
    %v670 = vsel %vm654, %v603, 0.0
    %v671 = vsel %vm655, %v604, 0.0
    %v672 = vsel %vm656, %v605, 0.0
    %v673 = vsel %vm657, %v606, 0.0
    %v674 = vsel %vm658, %v607, 0.0
    %v675 = vsel %vm659, %v608, 0.0
    %v676 = vsel %vm660, %v609, 0.0
    %v677 = vsel %vm661, %v610, 0.0
    %v678 = vsel %vm662, %v611, 0.0
    %v679 = vsel %vm663, %v612, 0.0
    %v680 = vsel %vm664, %v613, 0.0
    %v681 = vsel %vm665, %v614, 0.0
    %v682 = vsel %vm666, %v615, 0.0
    %v683 = vsel %vm667, %v616, 0.0
    %v684 = vsel %vm668, %v617, 0.0
    %v685 = vsel %vm669, %v618, 0.0
    %v686 = vpack.c.bf16 %v671, %v670
    %v687 = vpack.c.bf16 %v673, %v672
    %v688 = vpack.c.bf16 %v675, %v674
    %v689 = vpack.c.bf16 %v677, %v676
    %v690 = vpack.c.bf16 %v679, %v678
    %v691 = vpack.c.bf16 %v681, %v680
    %v692 = vpack.c.bf16 %v683, %v682
    %v693 = vpack.c.bf16 %v685, %v684
    %v702 = vunpack.c.l.b16 %v686
    %v703 = vunpack.c.h.b16 %v686
    %v704 = vunpack.c.l.b16 %v687
    %v705 = vunpack.c.h.b16 %v687
    %v706 = vunpack.c.l.b16 %v688
    %v707 = vunpack.c.h.b16 %v688
    %v708 = vunpack.c.l.b16 %v689
    %v709 = vunpack.c.h.b16 %v689
    %v710 = vunpack.c.l.b16 %v690
    %v711 = vunpack.c.h.b16 %v690
    %v712 = vunpack.c.l.b16 %v691
    %v713 = vunpack.c.h.b16 %v691
    %v714 = vunpack.c.l.b16 %v692
    %v715 = vunpack.c.h.b16 %v692
    %v716 = vunpack.c.l.b16 %v693
    %v717 = vunpack.c.h.b16 %v693
    %v718 = vpack.c.b16 %v702, %v702
    %v719 = vpack.c.b16 %v703, %v703
    %v720 = vpack.c.b16 %v704, %v704
    %v721 = vpack.c.b16 %v705, %v705
    %v722 = vpack.c.b16 %v706, %v706
    %v723 = vpack.c.b16 %v707, %v707
    %v724 = vpack.c.b16 %v708, %v708
    %v725 = vpack.c.b16 %v709, %v709
    %v726 = vpack.c.b16 %v710, %v710
    %v727 = vpack.c.b16 %v711, %v711
    %v728 = vpack.c.b16 %v712, %v712
    %v729 = vpack.c.b16 %v713, %v713
    %v730 = vpack.c.b16 %v714, %v714
    %v731 = vpack.c.b16 %v715, %v715
    %v732 = vpack.c.b16 %v716, %v716
    %v733 = vpack.c.b16 %v717, %v717
    %750 = vst [vmem:[%s8] sm:$0xf] %v718
    %751 = vst [vmem:[%s8 + $0x4] sm:$0xf] %v719
    %752 = vst [vmem:[%s8 + $0x8] sm:$0xf] %v720
    %753 = vst [vmem:[%s8 + $0xc] sm:$0xf] %v721
    %754 = vst [vmem:[%s8 + $0x10] sm:$0xf] %v722
    %755 = vst [vmem:[%s8 + $0x14] sm:$0xf] %v723
    %756 = vst [vmem:[%s8 + $0x18] sm:$0xf] %v724
    %757 = vst [vmem:[%s8 + $0x1c] sm:$0xf] %v725
    %758 = vst [vmem:[%s8 + $0x20] sm:$0xf] %v726
    %759 = vst [vmem:[%s8 + $0x24] sm:$0xf] %v727
    %760 = vst [vmem:[%s8 + $0x28] sm:$0xf] %v728
    %761 = vst [vmem:[%s8 + $0x2c] sm:$0xf] %v729
    %762 = vst [vmem:[%s8 + $0x30] sm:$0xf] %v730
    %763 = vst [vmem:[%s8 + $0x34] sm:$0xf] %v731
    %764 = vst [vmem:[%s8 + $0x38] sm:$0xf] %v732
    %765 = vst [vmem:[%s8 + $0x3c] sm:$0xf] %v733
    %v766 = vld [vmem:[%s7] sm:$0xf]
    %767 = vmatprep.subr.bf16.mxu0 0
    %768 = vmatpush1.bf16.msra.mxu0 %v693
    %769 = vmatprep.subr.bf16.mxu0 0
    %770 = vmatpush1.bf16.msra.mxu0 %v692
    %771 = vmatprep.subr.bf16.mxu0 0
    %772 = vmatpush1.bf16.msra.mxu0 %v691
    %773 = vmatprep.subr.bf16.mxu0 0
    %774 = vmatpush1.bf16.msra.mxu0 %v690
    %775 = vmatprep.subr.bf16.mxu0 0
    %776 = vmatpush1.bf16.msra.mxu0 %v689
    %777 = vmatprep.subr.bf16.mxu0 0
    %778 = vmatpush1.bf16.msra.mxu0 %v688
    %779 = vmatprep.subr.bf16.mxu0 0
    %780 = vmatpush1.bf16.msra.mxu0 %v687
    %781 = vmatprep.subr.bf16.mxu0 0
    %782 = vmatpush1.bf16.msra.mxu0 %v686
    %783 = vmatprep.subr.bf16.mxu0 0
    %784 = vmatpush2.bf16.msra.mxu0 0
    %785 = vmatprep.subr.bf16.mxu0 0
    %786 = vmatpush2.bf16.msra.mxu0 0
    %787 = vmatprep.subr.bf16.mxu0 0
    %788 = vmatpush2.bf16.msra.mxu0 0
    %789 = vmatprep.subr.bf16.mxu0 0
    %790 = vmatpush2.bf16.msra.mxu0 0
    %791 = vmatprep.subr.bf16.mxu0 0
    %792 = vmatpush2.bf16.msra.mxu0 0
    %793 = vmatprep.subr.bf16.mxu0 0
    %794 = vmatpush2.bf16.msra.mxu0 0
    %795 = vmatprep.subr.bf16.mxu0 0
    %796 = vmatpush2.bf16.msra.mxu0 0
    %797 = vmatprep.subr.bf16.mxu0 0
    %798 = vmatpush2.bf16.msra.mxu0 0
    %799 = vmatprep.mubr.bf16.mxu0 0
    %800 = vmatmul.mubr.bf16.gmra.mxu0 %v766
    %v801 = vpop.f32.mrf.mxu0
    %v802 = vadd.f32 0.0, %v801
    %v803 = vpop.f32.mrf.mxu0
    %v804 = vpop.f32.mrf.mxu0
    %v805 = vpop.f32.mrf.mxu0
    %806 = vdwg.mxu0
    %807 = vst [vmem:[%s9] sm:$0xff] %v802
  $region37: #{gconv_forward.2} parent=0 // pred_fallthru
    _
  // Predicated region
  $region38: #{gconv_forward.2} parent=0 // pred_check
    _
  $region39: #{gconv_forward.2} parent=0 // pred_check_branch
    %809 = sbr.rel (0) target = $region41
  $region40: #{gconv_forward.2} parent=0 // pred_region
    _
  $region41: #{gconv_forward.2} parent=0 // pred_fallthru
    _
  // Predicated region
  $region42: #{gconv_forward.2} parent=0 // pred_check
    _
  $region43: #{gconv_forward.2} parent=0 // pred_check_branch
    %811 = sbr.rel (0) target = $region45
  $region44: #{gconv_forward.2} parent=0 // pred_region
    _
  $region45: #{gconv_forward.2} parent=0 // pred_fallthru
    _
  // Predicated region
  $region46: #{gconv_forward.2} parent=0 // pred_check
    _
  $region47: #{gconv_forward.2} parent=0 // pred_check_branch
    %813 = sbr.rel (0) target = $region49
  $region48: #{gconv_forward.2} parent=0 // pred_region
    _
  $region49: #{gconv_forward.2} parent=0 // pred_fallthru
    _
  // Predicated region
  $region50: #{gconv_forward.2} parent=0 // pred_check
    _
  $region51: #{gconv_forward.2} parent=0 // pred_check_branch
    %815 = sbr.rel (0) target = $region53
  $region52: #{gconv_forward.2} parent=0 // pred_region
    _
  $region53: #{gconv_forward.2} parent=0 // pred_fallthru
    _

</llo_original>
